<compile_context>
chip_gen: v7x
topology: tpu7x:2x2x1
jax: 0.10.0
libtpu: 0.0.40
codegen_flags: <defaults>
</compile_context>

<pallas_src>
import jax
import jax.numpy as jnp
from jax import lax
from jax.experimental import pallas as pl
from jax.experimental.pallas import tpu as pltpu

# ----------------------------- model config -----------------------------
USER_SIZE = 32
ITEM_SIZE = 48
EMBED_SIZE = 8                 # GMF embedding size
LAYERS = [16, 32, 16, 8]       # MLP tower; MLP embed size = LAYERS[0] // 2
MLP_EMBED = LAYERS[0] // 2
BATCH = 8

LANE = 128                     # pad every feature dim to full lane width

# Lane offsets for the packed layout.
GMF_OFF = 0                                   # gmf embeddings / gmf_uv
MLPU_OFF = EMBED_SIZE                         # mlp_u embedding lanes
MLPI_OFF = EMBED_SIZE + MLP_EMBED             # mlp_i embedding lanes
MLP_OUT_OFF = EMBED_SIZE                      # final MLP activations (disjoint from gmf_uv)

assert USER_SIZE <= LANE and ITEM_SIZE <= LANE
assert MLPI_OFF + MLP_EMBED <= LANE
assert max(LAYERS) <= LANE and MLP_OUT_OFF + LAYERS[-1] <= LANE


def _pad2(a, rows, cols, dtype, row_off=0, col_off=0):
    """Zero-pad a 2-D array into (rows, cols) at the given offset; zeros keep
    padded lanes from leaking into the real computation."""
    out = jnp.zeros((rows, cols), dtype)
    return out.at[row_off:row_off + a.shape[0],
                  col_off:col_off + a.shape[1]].set(a.astype(dtype))


# ----------------------------- Pallas kernel -----------------------------
def neumf_kernel(
    uidx_ref, iidx_ref,
    u_tbl_ref, i_tbl_ref,
    w1_ref, b1_ref, w2_ref, b2_ref, w3_ref, b3_ref,
    wo_ref, bo_ref,
    out_ref,
):
    f32 = jnp.float32
    bf16 = jnp.bfloat16
    bB = uidx_ref.shape[0]
    lane_ids = lax.broadcasted_iota(jnp.int32, (bB, LANE), 1)

    # In-kernel embedding gather: one-hot (bB,128) @ table (128,128) on the MXU.
    # (bB,1) index block broadcasts against the lane iota; one-hot is exact bf16.
    onehot_u = (uidx_ref[...] == lane_ids).astype(bf16)
    onehot_i = (iidx_ref[...] == lane_ids).astype(bf16)

    # Packed gathers: eu carries gmf_u @ lanes 0:8 and mlp_u @ lanes 8:16;
    #                 ei carries gmf_i @ lanes 0:8 and mlp_i @ lanes 16:24.
    eu = jnp.dot(onehot_u, u_tbl_ref[...], preferred_element_type=f32)
    ei = jnp.dot(onehot_i, i_tbl_ref[...], preferred_element_type=f32)

    # GMF branch: the non-GMF lanes of eu/ei are disjoint (zero in the other
    # operand), so the elementwise product is gmf_u*gmf_i in lanes 0:8, else 0.
    gmf_uv = eu * ei

    # MLP branch: eu+ei holds mlp_u @ 8:16 and mlp_i @ 16:24 (exact sum since
    # the meaningful lanes are disjoint); lanes 0:8 hold gmf garbage that the
    # zero rows 0:8 of the packed w1 annihilate.
    # TODO(synk): dropout with p>0 not implemented; module default drop=0 -> identity.
    x = (eu + ei).astype(bf16)
    x = jnp.maximum(
        jnp.dot(x, w1_ref[...], preferred_element_type=f32) + b1_ref[...], 0.0)
    x = jnp.maximum(
        jnp.dot(x.astype(bf16), w2_ref[...], preferred_element_type=f32) + b2_ref[...], 0.0)
    # w3's output columns (and b3) are placed at lanes 8:16, so the MLP output
    # and gmf_uv occupy disjoint lanes.
    x = jnp.maximum(
        jnp.dot(x.astype(bf16), w3_ref[...], preferred_element_type=f32) + b3_ref[...], 0.0)

    # Output head: the GMF||MLP concat is a lane-disjoint sum; packed wo has
    # the gmf half in rows 0:8 and the mlp half in rows 8:16, all in column 0.
    head = (gmf_uv + x).astype(bf16)
    out_ref[...] = (
        jnp.dot(head, wo_ref[...], preferred_element_type=f32) + bo_ref[...])


# ----------------------------- wrapper -----------------------------
def neumf_forward(user, item, tables, params, *, block_b=None):
    """Fused NeuMF forward. user/item: (B,) int indices. Returns (B,) f32 logits."""
    gmf_u_tbl, gmf_i_tbl, mlp_u_tbl, mlp_i_tbl = tables
    w1, b1, w2, b2, w3, b3, wo, bo = params
    bf16, f32 = jnp.bfloat16, jnp.float32

    B = user.shape[0]
    if block_b is None:
        if B <= 256:
            # Tiny/medium batch: one (8-aligned) block -> no padding waste.
            block_b = max(8, ((B + 7) // 8) * 8)
        else:
            # Large serving batch: >=2 grid steps so both v7x TCs participate.
            block_b = 256
    B_pad = pl.cdiv(B, block_b) * block_b

    # Index inputs as (B_pad, 1) int32; lane broadcast happens in-kernel.
    uidx = jnp.zeros((B_pad, 1), jnp.int32).at[:B, 0].set(user.astype(jnp.int32))
    iidx = jnp.zeros((B_pad, 1), jnp.int32).at[:B, 0].set(item.astype(jnp.int32))

    # ---- packed, 128-lane-padded, bf16 weights (biases stay f32 for the VPU) ----
    u_tbl = (_pad2(gmf_u_tbl, LANE, LANE, bf16, col_off=GMF_OFF)
             + _pad2(mlp_u_tbl, LANE, LANE, bf16, col_off=MLPU_OFF))
    i_tbl = (_pad2(gmf_i_tbl, LANE, LANE, bf16, col_off=GMF_OFF)
             + _pad2(mlp_i_tbl, LANE, LANE, bf16, col_off=MLPI_OFF))
    w1_p = (_pad2(w1[:MLP_EMBED], LANE, LANE, bf16, row_off=MLPU_OFF)
            + _pad2(w1[MLP_EMBED:], LANE, LANE, bf16, row_off=MLPI_OFF))
    w2_p = _pad2(w2, LANE, LANE, bf16)
    w3_p = _pad2(w3, LANE, LANE, bf16, col_off=MLP_OUT_OFF)
    wo_p = (_pad2(wo[:EMBED_SIZE], LANE, LANE, bf16, row_off=GMF_OFF)
            + _pad2(wo[EMBED_SIZE:], LANE, LANE, bf16, row_off=MLP_OUT_OFF))
    b1_p = _pad2(b1, 1, LANE, f32)
    b2_p = _pad2(b2, 1, LANE, f32)
    b3_p = _pad2(b3, 1, LANE, f32, col_off=MLP_OUT_OFF)
    bo_p = _pad2(bo, 1, LANE, f32)

    weights = (u_tbl, i_tbl, w1_p, b1_p, w2_p, b2_p, w3_p, b3_p, wo_p, bo_p)

    idx_spec = pl.BlockSpec((block_b, 1), lambda i: (i, 0))
    out_spec = pl.BlockSpec((block_b, LANE), lambda i: (i, 0))

    def resident(arr):  # weights stay VMEM-resident across grid steps
        return pl.BlockSpec(arr.shape, lambda i: (0, 0))

    out = pl.pallas_call(
        neumf_kernel,
        out_shape=jax.ShapeDtypeStruct((B_pad, LANE), jnp.float32),
        grid=(B_pad // block_b,),
        in_specs=[idx_spec, idx_spec] + [resident(w) for w in weights],
        out_specs=out_spec,
        compiler_params=pltpu.CompilerParams(
            dimension_semantics=("parallel",)),
    )(uidx, iidx, *weights)

    # Logit lives in column 0 of the lane-dense output slab; .view(-1) semantics.
    return out[:B, 0]


# ----------------------------- parameter init -----------------------------
def init_params(key):
    ks = jax.random.split(key, 12)
    scale = 0.1
    gmf_u_tbl = scale * jax.random.normal(ks[0], (USER_SIZE, EMBED_SIZE), jnp.float32)
    gmf_i_tbl = scale * jax.random.normal(ks[1], (ITEM_SIZE, EMBED_SIZE), jnp.float32)
    mlp_u_tbl = scale * jax.random.normal(ks[2], (USER_SIZE, MLP_EMBED), jnp.float32)
    mlp_i_tbl = scale * jax.random.normal(ks[3], (ITEM_SIZE, MLP_EMBED), jnp.float32)
    w1 = scale * jax.random.normal(ks[4], (LAYERS[0], LAYERS[1]), jnp.float32)
    b1 = scale * jax.random.normal(ks[5], (1, LAYERS[1]), jnp.float32)
    w2 = scale * jax.random.normal(ks[6], (LAYERS[1], LAYERS[2]), jnp.float32)
    b2 = scale * jax.random.normal(ks[7], (1, LAYERS[2]), jnp.float32)
    w3 = scale * jax.random.normal(ks[8], (LAYERS[2], LAYERS[3]), jnp.float32)
    b3 = scale * jax.random.normal(ks[9], (1, LAYERS[3]), jnp.float32)
    wo = scale * jax.random.normal(ks[10], (EMBED_SIZE + LAYERS[-1], 1), jnp.float32)
    bo = scale * jax.random.normal(ks[11], (1, 1), jnp.float32)
    tables = (gmf_u_tbl, gmf_i_tbl, mlp_u_tbl, mlp_i_tbl)
    params = (w1, b1, w2, b2, w3, b3, wo, bo)
    return tables, params


def reference_forward(user, item, tables, params):
    gmf_u_tbl, gmf_i_tbl, mlp_u_tbl, mlp_i_tbl = tables
    w1, b1, w2, b2, w3, b3, wo, bo = params
    gmf_uv = gmf_u_tbl[user] * gmf_i_tbl[item]
    x = jnp.concatenate([mlp_u_tbl[user], mlp_i_tbl[item]], axis=-1)
    x = jax.nn.relu(x @ w1 + b1)
    x = jax.nn.relu(x @ w2 + b2)
    x = jax.nn.relu(x @ w3 + b3)
    uv = jnp.concatenate([gmf_uv, x], axis=-1)
    return (uv @ wo + bo).reshape(-1)


# ----------------------------- main -----------------------------
if __name__ == "__main__":
    key = jax.random.PRNGKey(0)
    k_param, k_user, k_item = jax.random.split(key, 3)
    tables, params = init_params(k_param)

    user = jax.random.randint(k_user, (BATCH,), 0, USER_SIZE)
    item = jax.random.randint(k_item, (BATCH,), 0, ITEM_SIZE)

    out = neumf_forward(user, item, tables, params)
    out = jax.block_until_ready(out)

    ref = reference_forward(user, item, tables, params)
    assert out.shape == (BATCH,)
    # bf16 matmul operands (f32 accumulation) -> ~1e-3-level rounding vs the
    # pure-f32 reference; tolerance relaxed accordingly per the review.
    assert jnp.allclose(out, ref, atol=1e-2, rtol=1e-2), (out, ref)
    print("KERNEL_OK")
</pallas_src>

<mosaic_0001>
module attributes {stable_mosaic.version = 11 : i64} {
  func.func @neumf_kernel(%arg0: i32, %arg1: memref<8x1xi32, #tpu.memory_space<vmem>>, %arg2: memref<8x1xi32, #tpu.memory_space<vmem>>, %arg3: memref<128x128xbf16, #tpu.memory_space<vmem>>, %arg4: memref<128x128xbf16, #tpu.memory_space<vmem>>, %arg5: memref<128x128xbf16, #tpu.memory_space<vmem>>, %arg6: memref<1x128xf32, #tpu.memory_space<vmem>>, %arg7: memref<128x128xbf16, #tpu.memory_space<vmem>>, %arg8: memref<1x128xf32, #tpu.memory_space<vmem>>, %arg9: memref<128x128xbf16, #tpu.memory_space<vmem>>, %arg10: memref<1x128xf32, #tpu.memory_space<vmem>>, %arg11: memref<128x128xbf16, #tpu.memory_space<vmem>>, %arg12: memref<1x128xf32, #tpu.memory_space<vmem>>, %arg13: memref<8x128xf32, #tpu.memory_space<vmem>>) attributes {dimension_semantics = [#tpu.dimension_semantics<parallel>], iteration_bounds = array<i64: 1>, scalar_prefetch = 0 : i64, scratch_operands = 0 : i64, tpu.core_type = #tpu.core_type<tc>, window_params = [{transform_indices = @transform_0, window_bounds = array<i64: 8, 1>}, {transform_indices = @transform_1, window_bounds = array<i64: 8, 1>}, {pipeline_mode = #tpu.pipeline_mode<synchronous>, transform_indices = @transform_2, window_bounds = array<i64: 128, 128>}, {pipeline_mode = #tpu.pipeline_mode<synchronous>, transform_indices = @transform_3, window_bounds = array<i64: 128, 128>}, {pipeline_mode = #tpu.pipeline_mode<synchronous>, transform_indices = @transform_4, window_bounds = array<i64: 128, 128>}, {pipeline_mode = #tpu.pipeline_mode<synchronous>, transform_indices = @transform_5, window_bounds = array<i64: 1, 128>}, {pipeline_mode = #tpu.pipeline_mode<synchronous>, transform_indices = @transform_6, window_bounds = array<i64: 128, 128>}, {pipeline_mode = #tpu.pipeline_mode<synchronous>, transform_indices = @transform_7, window_bounds = array<i64: 1, 128>}, {pipeline_mode = #tpu.pipeline_mode<synchronous>, transform_indices = @transform_8, window_bounds = array<i64: 128, 128>}, {pipeline_mode = #tpu.pipeline_mode<synchronous>, transform_indices = @transform_9, window_bounds = array<i64: 1, 128>}, {pipeline_mode = #tpu.pipeline_mode<synchronous>, transform_indices = @transform_10, window_bounds = array<i64: 128, 128>}, {pipeline_mode = #tpu.pipeline_mode<synchronous>, transform_indices = @transform_11, window_bounds = array<i64: 1, 128>}, {transform_indices = @transform_12, window_bounds = array<i64: 8, 128>}]} {
    %0 = tpu.iota {dimensions = array<i32: 1>} : vector<8x128xi32>
    %c0 = arith.constant 0 : index
    %c0_0 = arith.constant 0 : index
    %1 = vector.load %arg1[%c0, %c0_0] : memref<8x1xi32, #tpu.memory_space<vmem>>, vector<8x1xi32>
    %2 = vector.broadcast %1 : vector<8x1xi32> to vector<8x128xi32>
    %3 = arith.cmpi eq, %2, %0 : vector<8x128xi32>
    %4 = arith.extui %3 : vector<8x128xi1> to vector<8x128xi32>
    %5 = arith.sitofp %4 : vector<8x128xi32> to vector<8x128xf32>
    %6 = arith.truncf %5 : vector<8x128xf32> to vector<8x128xbf16>
    %c0_1 = arith.constant 0 : index
    %c0_2 = arith.constant 0 : index
    %7 = vector.load %arg2[%c0_1, %c0_2] : memref<8x1xi32, #tpu.memory_space<vmem>>, vector<8x1xi32>
    %8 = vector.broadcast %7 : vector<8x1xi32> to vector<8x128xi32>
    %9 = arith.cmpi eq, %8, %0 : vector<8x128xi32>
    %10 = arith.extui %9 : vector<8x128xi1> to vector<8x128xi32>
    %11 = arith.sitofp %10 : vector<8x128xi32> to vector<8x128xf32>
    %12 = arith.truncf %11 : vector<8x128xf32> to vector<8x128xbf16>
    %c0_3 = arith.constant 0 : index
    %c0_4 = arith.constant 0 : index
    %13 = vector.load %arg3[%c0_3, %c0_4] : memref<128x128xbf16, #tpu.memory_space<vmem>>, vector<128x128xbf16>
    %cst = arith.constant dense<0.000000e+00> : vector<8x128xf32>
    %14 = tpu.matmul %6, %13, %cst {dimension_numbers = #tpu.dot_dimension_numbers<[1], [0], [0], [1], [0, 0, 1, 1], [], []>} : vector<8x128xbf16>, vector<128x128xbf16>, vector<8x128xf32> -> vector<8x128xf32>
    %c0_5 = arith.constant 0 : index
    %c0_6 = arith.constant 0 : index
    %15 = vector.load %arg4[%c0_5, %c0_6] : memref<128x128xbf16, #tpu.memory_space<vmem>>, vector<128x128xbf16>
    %cst_7 = arith.constant dense<0.000000e+00> : vector<8x128xf32>
    %16 = tpu.matmul %12, %15, %cst_7 {dimension_numbers = #tpu.dot_dimension_numbers<[1], [0], [0], [1], [0, 0, 1, 1], [], []>} : vector<8x128xbf16>, vector<128x128xbf16>, vector<8x128xf32> -> vector<8x128xf32>
    %17 = arith.mulf %14, %16 : vector<8x128xf32>
    %18 = arith.addf %14, %16 : vector<8x128xf32>
    %19 = arith.truncf %18 : vector<8x128xf32> to vector<8x128xbf16>
    %c0_8 = arith.constant 0 : index
    %c0_9 = arith.constant 0 : index
    %20 = vector.load %arg5[%c0_8, %c0_9] : memref<128x128xbf16, #tpu.memory_space<vmem>>, vector<128x128xbf16>
    %cst_10 = arith.constant dense<0.000000e+00> : vector<8x128xf32>
    %21 = tpu.matmul %19, %20, %cst_10 {dimension_numbers = #tpu.dot_dimension_numbers<[1], [0], [0], [1], [0, 0, 1, 1], [], []>} : vector<8x128xbf16>, vector<128x128xbf16>, vector<8x128xf32> -> vector<8x128xf32>
    %c0_11 = arith.constant 0 : index
    %c0_12 = arith.constant 0 : index
    %22 = vector.load %arg6[%c0_11, %c0_12] : memref<1x128xf32, #tpu.memory_space<vmem>>, vector<1x128xf32>
    %23 = vector.broadcast %22 : vector<1x128xf32> to vector<8x128xf32>
    %24 = arith.addf %21, %23 : vector<8x128xf32>
    %cst_13 = arith.constant 0.000000e+00 : f32
    %25 = vector.broadcast %cst_13 : f32 to vector<8x128xf32>
    %26 = arith.maximumf %24, %25 : vector<8x128xf32>
    %27 = arith.truncf %26 : vector<8x128xf32> to vector<8x128xbf16>
    %c0_14 = arith.constant 0 : index
    %c0_15 = arith.constant 0 : index
    %28 = vector.load %arg7[%c0_14, %c0_15] : memref<128x128xbf16, #tpu.memory_space<vmem>>, vector<128x128xbf16>
    %cst_16 = arith.constant dense<0.000000e+00> : vector<8x128xf32>
    %29 = tpu.matmul %27, %28, %cst_16 {dimension_numbers = #tpu.dot_dimension_numbers<[1], [0], [0], [1], [0, 0, 1, 1], [], []>} : vector<8x128xbf16>, vector<128x128xbf16>, vector<8x128xf32> -> vector<8x128xf32>
    %c0_17 = arith.constant 0 : index
    %c0_18 = arith.constant 0 : index
    %30 = vector.load %arg8[%c0_17, %c0_18] : memref<1x128xf32, #tpu.memory_space<vmem>>, vector<1x128xf32>
    %31 = vector.broadcast %30 : vector<1x128xf32> to vector<8x128xf32>
    %32 = arith.addf %29, %31 : vector<8x128xf32>
    %cst_19 = arith.constant 0.000000e+00 : f32
    %33 = vector.broadcast %cst_19 : f32 to vector<8x128xf32>
    %34 = arith.maximumf %32, %33 : vector<8x128xf32>
    %35 = arith.truncf %34 : vector<8x128xf32> to vector<8x128xbf16>
    %c0_20 = arith.constant 0 : index
    %c0_21 = arith.constant 0 : index
    %36 = vector.load %arg9[%c0_20, %c0_21] : memref<128x128xbf16, #tpu.memory_space<vmem>>, vector<128x128xbf16>
    %cst_22 = arith.constant dense<0.000000e+00> : vector<8x128xf32>
    %37 = tpu.matmul %35, %36, %cst_22 {dimension_numbers = #tpu.dot_dimension_numbers<[1], [0], [0], [1], [0, 0, 1, 1], [], []>} : vector<8x128xbf16>, vector<128x128xbf16>, vector<8x128xf32> -> vector<8x128xf32>
    %c0_23 = arith.constant 0 : index
    %c0_24 = arith.constant 0 : index
    %38 = vector.load %arg10[%c0_23, %c0_24] : memref<1x128xf32, #tpu.memory_space<vmem>>, vector<1x128xf32>
    %39 = vector.broadcast %38 : vector<1x128xf32> to vector<8x128xf32>
    %40 = arith.addf %37, %39 : vector<8x128xf32>
    %cst_25 = arith.constant 0.000000e+00 : f32
    %41 = vector.broadcast %cst_25 : f32 to vector<8x128xf32>
    %42 = arith.maximumf %40, %41 : vector<8x128xf32>
    %43 = arith.addf %17, %42 : vector<8x128xf32>
    %44 = arith.truncf %43 : vector<8x128xf32> to vector<8x128xbf16>
    %c0_26 = arith.constant 0 : index
    %c0_27 = arith.constant 0 : index
    %45 = vector.load %arg11[%c0_26, %c0_27] : memref<128x128xbf16, #tpu.memory_space<vmem>>, vector<128x128xbf16>
    %cst_28 = arith.constant dense<0.000000e+00> : vector<8x128xf32>
    %46 = tpu.matmul %44, %45, %cst_28 {dimension_numbers = #tpu.dot_dimension_numbers<[1], [0], [0], [1], [0, 0, 1, 1], [], []>} : vector<8x128xbf16>, vector<128x128xbf16>, vector<8x128xf32> -> vector<8x128xf32>
    %c0_29 = arith.constant 0 : index
    %c0_30 = arith.constant 0 : index
    %47 = vector.load %arg12[%c0_29, %c0_30] : memref<1x128xf32, #tpu.memory_space<vmem>>, vector<1x128xf32>
    %48 = vector.broadcast %47 : vector<1x128xf32> to vector<8x128xf32>
    %49 = arith.addf %46, %48 : vector<8x128xf32>
    %c0_31 = arith.constant 0 : index
    %c0_32 = arith.constant 0 : index
    %50 = vector.load %arg13[%c0_31, %c0_32] : memref<8x128xf32, #tpu.memory_space<vmem>>, vector<8x128xf32>
    tpu.vector_store %arg13[%c0_31, %c0_32], %49 {strides = array<i32>} : memref<8x128xf32, #tpu.memory_space<vmem>>, vector<8x128xf32>,
    return
  }
  func.func @transform_0(%arg0: i32) -> (i32, i32) {
    %c0_i32 = arith.constant 0 : i32
    %c0_i32_0 = arith.constant 0 : i32
    return %arg0, %c0_i32 : i32, i32
  }
  func.func @transform_1(%arg0: i32) -> (i32, i32) {
    %c0_i32 = arith.constant 0 : i32
    %c0_i32_0 = arith.constant 0 : i32
    return %arg0, %c0_i32 : i32, i32
  }
  func.func @transform_2(%arg0: i32) -> (i32, i32) {
    %c0_i32 = arith.constant 0 : i32
    %c0_i32_0 = arith.constant 0 : i32
    %c0_i32_1 = arith.constant 0 : i32
    return %c0_i32, %c0_i32_0 : i32, i32
  }
  func.func @transform_3(%arg0: i32) -> (i32, i32) {
    %c0_i32 = arith.constant 0 : i32
    %c0_i32_0 = arith.constant 0 : i32
    %c0_i32_1 = arith.constant 0 : i32
    return %c0_i32, %c0_i32_0 : i32, i32
  }
  func.func @transform_4(%arg0: i32) -> (i32, i32) {
    %c0_i32 = arith.constant 0 : i32
    %c0_i32_0 = arith.constant 0 : i32
    %c0_i32_1 = arith.constant 0 : i32
    return %c0_i32, %c0_i32_0 : i32, i32
  }
  func.func @transform_5(%arg0: i32) -> (i32, i32) {
    %c0_i32 = arith.constant 0 : i32
    %c0_i32_0 = arith.constant 0 : i32
    %c0_i32_1 = arith.constant 0 : i32
    return %c0_i32, %c0_i32_0 : i32, i32
  }
  func.func @transform_6(%arg0: i32) -> (i32, i32) {
    %c0_i32 = arith.constant 0 : i32
    %c0_i32_0 = arith.constant 0 : i32
    %c0_i32_1 = arith.constant 0 : i32
    return %c0_i32, %c0_i32_0 : i32, i32
  }
  func.func @transform_7(%arg0: i32) -> (i32, i32) {
    %c0_i32 = arith.constant 0 : i32
    %c0_i32_0 = arith.constant 0 : i32
    %c0_i32_1 = arith.constant 0 : i32
    return %c0_i32, %c0_i32_0 : i32, i32
  }
  func.func @transform_8(%arg0: i32) -> (i32, i32) {
    %c0_i32 = arith.constant 0 : i32
    %c0_i32_0 = arith.constant 0 : i32
    %c0_i32_1 = arith.constant 0 : i32
    return %c0_i32, %c0_i32_0 : i32, i32
  }
  func.func @transform_9(%arg0: i32) -> (i32, i32) {
    %c0_i32 = arith.constant 0 : i32
    %c0_i32_0 = arith.constant 0 : i32
    %c0_i32_1 = arith.constant 0 : i32
    return %c0_i32, %c0_i32_0 : i32, i32
  }
  func.func @transform_10(%arg0: i32) -> (i32, i32) {
    %c0_i32 = arith.constant 0 : i32
    %c0_i32_0 = arith.constant 0 : i32
    %c0_i32_1 = arith.constant 0 : i32
    return %c0_i32, %c0_i32_0 : i32, i32
  }
  func.func @transform_11(%arg0: i32) -> (i32, i32) {
    %c0_i32 = arith.constant 0 : i32
    %c0_i32_0 = arith.constant 0 : i32
    %c0_i32_1 = arith.constant 0 : i32
    return %c0_i32, %c0_i32_0 : i32, i32
  }
  func.func @transform_12(%arg0: i32) -> (i32, i32) {
    %c0_i32 = arith.constant 0 : i32
    %c0_i32_0 = arith.constant 0 : i32
    return %arg0, %c0_i32 : i32, i32
  }
}

</mosaic_0001>

<llo_original>
// kernel: tpu_custom_call.1
$region0: #{tpu_custom_call.1}
  #allocation0 [shape = 'u32[]', space=smem, size = 0x4, offset = 0x4, fixed_abs, tag = 'smem constant byte address 0x4 - core index']
  #allocation1 [shape = 'u32[144,128]{1,0:T(1,128)}', space=vmem, size = 0x12000, scoped, tag = 'internal scratch']
  %s0 = inlined_call_operand.vmem [shape: s32[8,1], index: 0, kind: input, shape index: {}]
  %s1 = inlined_call_operand.vmem [shape: s32[8,1], index: 1, kind: input, shape index: {}]
  %s2 = inlined_call_operand.hbm [shape: bf16[128,128], index: 2, kind: input, shape index: {}]
  %s3 = inlined_call_operand.hbm [shape: bf16[128,128], index: 3, kind: input, shape index: {}]
  %s4 = inlined_call_operand.hbm [shape: bf16[128,128], index: 4, kind: input, shape index: {}]
  %s5 = inlined_call_operand.vmem [shape: f32[1,128], index: 5, kind: input, shape index: {}]
  %s6 = inlined_call_operand.hbm [shape: bf16[128,128], index: 6, kind: input, shape index: {}]
  %s7 = inlined_call_operand.vmem [shape: f32[1,128], index: 7, kind: input, shape index: {}]
  %s8 = inlined_call_operand.hbm [shape: bf16[128,128], index: 8, kind: input, shape index: {}]
  %s9 = inlined_call_operand.vmem [shape: f32[1,128], index: 9, kind: input, shape index: {}]
  %s10 = inlined_call_operand.hbm [shape: bf16[128,128], index: 10, kind: input, shape index: {}]
  %s11 = inlined_call_operand.vmem [shape: f32[1,128], index: 11, kind: input, shape index: {}]
  %s12 = inlined_call_operand.hbm [shape: f32[8,128], index: 12, kind: output, shape index: {}]
  %s13 = sld [smem:[#allocation0]]
  $region82: #{tpu_custom_call.1} parent=0
    _
  %s15 = ssub.s32 1, %s13
  %s16 = scalar_select 0, %s15, %s13
  $region1: #{tpu_custom_call.1} parent=0
    #allocation2 [shape = 'u8[32768]{0}', space=vmem, size = 0x8000, scoped, tag = 'input window, operand 2, single buffered']
    #allocation3 [shape = 's32[1]{0}', space=sflag, size = 0x4, scoped, tag = 'scoped memory for tpu_custom_call.1']
    #allocation4 [shape = 's32[1]{0}', space=sflag, size = 0x4, scoped, tag = 'scoped memory for tpu_custom_call.1']
    #allocation5 [shape = 'u8[32768]{0}', space=vmem, size = 0x8000, scoped, tag = 'input window, operand 3, single buffered']
    #allocation6 [shape = 's32[1]{0}', space=sflag, size = 0x4, scoped, tag = 'scoped memory for tpu_custom_call.1']
    #allocation7 [shape = 'u8[32768]{0}', space=vmem, size = 0x8000, scoped, tag = 'input window, operand 4, single buffered']
    #allocation8 [shape = 'u8[32768]{0}', space=vmem, size = 0x8000, scoped, tag = 'input window, operand 6, single buffered']
    #allocation9 [shape = 's32[1]{0}', space=sflag, size = 0x4, scoped, tag = 'scoped memory for tpu_custom_call.1']
    #allocation10 [shape = 'u8[32768]{0}', space=vmem, size = 0x8000, scoped, tag = 'input window, operand 8, single buffered']
    #allocation11 [shape = 'u8[32768]{0}', space=vmem, size = 0x8000, scoped, tag = 'input window, operand 10, single buffered']
    #allocation12 [shape = 's32[1]{0}', space=sflag, size = 0x4, scoped, tag = 'scoped memory for tpu_custom_call.1']
    #allocation13 [shape = 'u8[4096]{0}', space=vmem, size = 0x1000, scoped, tag = 'output window, operand 0, single buffered']
    %17 = vsyncpa [#allocation3], 0
    %18 = vsyncpa [#allocation6], 0
    %19 = vsyncpa [#allocation9], 0
    %20 = vsyncpa [#allocation12], 0
    %21 = vsyncpa [#allocation4], 0
    // Predicated region
    $region2: #{tpu_custom_call.1} parent=1 // pred_check
      _
    $region3: #{tpu_custom_call.1} parent=1 // pred_check_branch
      %23 = sbr.rel (0) target = $region5
    $region4: #{tpu_custom_call.1} parent=1 // pred_region
      _
    $region5: #{tpu_custom_call.1} parent=1 // pred_fallthru
      _
    // Predicated region
    $region6: #{tpu_custom_call.1} parent=1 // pred_check
      _
    $region7: #{tpu_custom_call.1} parent=1 // pred_check_branch
      %25 = sbr.rel (0) target = $region9
    $region8: #{tpu_custom_call.1} parent=1 // pred_region
      _
    $region9: #{tpu_custom_call.1} parent=1 // pred_fallthru
      _
    // Predicated region
    $region10: #{tpu_custom_call.1} parent=1 // pred_check
      _
    $region11: #{tpu_custom_call.1} parent=1 // pred_check_branch
      %27 = sbr.rel (0) target = $region13
    $region12: #{tpu_custom_call.1} parent=1 // pred_region
      %s29 = ssub.s32 1024, 1024
      %30 = vsyncadd [#allocation3], %s29
      %s31 = sshll.u32 [#allocation2], 4
      %s32 = int_to_ptr.vmem [resolvable:$true] %s31
      %37 = dma.hbm_to_vmem [thread:$0]  %s2, 1024, %s32, [#allocation3], 64, 64, 4
    $region13: #{tpu_custom_call.1} parent=1 // pred_fallthru
      _
    // Predicated region
    $region14: #{tpu_custom_call.1} parent=1 // pred_check
      _
    $region15: #{tpu_custom_call.1} parent=1 // pred_check_branch
      %39 = sbr.rel (0) target = $region17
    $region16: #{tpu_custom_call.1} parent=1 // pred_region
      %s41 = ssub.s32 1024, 1024
      %42 = vsyncadd [#allocation6], %s41
      %s43 = sshll.u32 [#allocation5], 4
      %s44 = int_to_ptr.vmem [resolvable:$true] %s43
      %49 = dma.hbm_to_vmem [thread:$0]  %s3, 1024, %s44, [#allocation6], 64, 64, 4
    $region17: #{tpu_custom_call.1} parent=1 // pred_fallthru
      _
    // Predicated region
    $region18: #{tpu_custom_call.1} parent=1 // pred_check
      _
    $region19: #{tpu_custom_call.1} parent=1 // pred_check_branch
      %51 = sbr.rel (0) target = $region21
    $region20: #{tpu_custom_call.1} parent=1 // pred_region
      %s53 = ssub.s32 1024, 1024
      %54 = vsyncadd [#allocation6], %s53
      %s55 = sshll.u32 [#allocation7], 4
      %s56 = int_to_ptr.vmem [resolvable:$true] %s55
      %61 = dma.hbm_to_vmem [thread:$0]  %s4, 1024, %s56, [#allocation6], 64, 64, 4
    $region21: #{tpu_custom_call.1} parent=1 // pred_fallthru
      _
    // Predicated region
    $region22: #{tpu_custom_call.1} parent=1 // pred_check
      _
    $region23: #{tpu_custom_call.1} parent=1 // pred_check_branch
      %63 = sbr.rel (0) target = $region25
    $region24: #{tpu_custom_call.1} parent=1 // pred_region
      _
    $region25: #{tpu_custom_call.1} parent=1 // pred_fallthru
      _
    // Predicated region
    $region26: #{tpu_custom_call.1} parent=1 // pred_check
      _
    $region27: #{tpu_custom_call.1} parent=1 // pred_check_branch
      %65 = sbr.rel (0) target = $region29
    $region28: #{tpu_custom_call.1} parent=1 // pred_region
      %s67 = ssub.s32 1024, 1024
      %68 = vsyncadd [#allocation9], %s67
      %s69 = sshll.u32 [#allocation8], 4
      %s70 = int_to_ptr.vmem [resolvable:$true] %s69
      %75 = dma.hbm_to_vmem [thread:$0]  %s6, 1024, %s70, [#allocation9], 64, 64, 4
    $region29: #{tpu_custom_call.1} parent=1 // pred_fallthru
      _
    // Predicated region
    $region30: #{tpu_custom_call.1} parent=1 // pred_check
      _
    $region31: #{tpu_custom_call.1} parent=1 // pred_check_branch
      %77 = sbr.rel (0) target = $region33
    $region32: #{tpu_custom_call.1} parent=1 // pred_region
      _
    $region33: #{tpu_custom_call.1} parent=1 // pred_fallthru
      _
    // Predicated region
    $region34: #{tpu_custom_call.1} parent=1 // pred_check
      _
    $region35: #{tpu_custom_call.1} parent=1 // pred_check_branch
      %79 = sbr.rel (0) target = $region37
    $region36: #{tpu_custom_call.1} parent=1 // pred_region
      %s81 = ssub.s32 1024, 1024
      %82 = vsyncadd [#allocation9], %s81
      %s83 = sshll.u32 [#allocation10], 4
      %s84 = int_to_ptr.vmem [resolvable:$true] %s83
      %89 = dma.hbm_to_vmem [thread:$0]  %s8, 1024, %s84, [#allocation9], 64, 64, 4
    $region37: #{tpu_custom_call.1} parent=1 // pred_fallthru
      _
    // Predicated region
    $region38: #{tpu_custom_call.1} parent=1 // pred_check
      _
    $region39: #{tpu_custom_call.1} parent=1 // pred_check_branch
      %91 = sbr.rel (0) target = $region41
    $region40: #{tpu_custom_call.1} parent=1 // pred_region
      _
    $region41: #{tpu_custom_call.1} parent=1 // pred_fallthru
      _
    // Predicated region
    $region42: #{tpu_custom_call.1} parent=1 // pred_check
      _
    $region43: #{tpu_custom_call.1} parent=1 // pred_check_branch
      %93 = sbr.rel (0) target = $region45
    $region44: #{tpu_custom_call.1} parent=1 // pred_region
      %s95 = ssub.s32 1024, 1024
      %96 = vsyncadd [#allocation12], %s95
      %s97 = sshll.u32 [#allocation11], 4
      %s98 = int_to_ptr.vmem [resolvable:$true] %s97
      %103 = dma.hbm_to_vmem [thread:$0]  %s10, 1024, %s98, [#allocation12], 64, 64, 4
    $region45: #{tpu_custom_call.1} parent=1 // pred_fallthru
      _
    // Predicated region
    $region46: #{tpu_custom_call.1} parent=1 // pred_check
      _
    $region47: #{tpu_custom_call.1} parent=1 // pred_check_branch
      %105 = sbr.rel (0) target = $region49
    $region48: #{tpu_custom_call.1} parent=1 // pred_region
      _
    $region49: #{tpu_custom_call.1} parent=1 // pred_fallthru
      _
    // Predicated region
    $region50: #{tpu_custom_call.1} parent=1 // pred_check
      _
    $region51: #{tpu_custom_call.1} parent=1 // pred_check_branch
      %107 = sbr.rel (0) target = $region53
    $region52: #{tpu_custom_call.1} parent=1 // pred_region
      %108 = dma.done [#allocation3], 1024
    $region53: #{tpu_custom_call.1} parent=1 // pred_fallthru
      _
    // Predicated region
    $region54: #{tpu_custom_call.1} parent=1 // pred_check
      _
    $region55: #{tpu_custom_call.1} parent=1 // pred_check_branch
      %110 = sbr.rel (0) target = $region57
    $region56: #{tpu_custom_call.1} parent=1 // pred_region
      %111 = dma.done [#allocation6], 1024
    $region57: #{tpu_custom_call.1} parent=1 // pred_fallthru
      _
    // Predicated region
    $region58: #{tpu_custom_call.1} parent=1 // pred_check
      _
    $region59: #{tpu_custom_call.1} parent=1 // pred_check_branch
      %113 = sbr.rel (0) target = $region61
    $region60: #{tpu_custom_call.1} parent=1 // pred_region
      %114 = dma.done [#allocation6], 1024
    $region61: #{tpu_custom_call.1} parent=1 // pred_fallthru
      _
    // Predicated region
    $region62: #{tpu_custom_call.1} parent=1 // pred_check
      _
    $region63: #{tpu_custom_call.1} parent=1 // pred_check_branch
      %116 = sbr.rel (0) target = $region65
    $region64: #{tpu_custom_call.1} parent=1 // pred_region
      %117 = dma.done [#allocation9], 1024
    $region65: #{tpu_custom_call.1} parent=1 // pred_fallthru
      _
    // Predicated region
    $region66: #{tpu_custom_call.1} parent=1 // pred_check
      _
    $region67: #{tpu_custom_call.1} parent=1 // pred_check_branch
      %119 = sbr.rel (0) target = $region69
    $region68: #{tpu_custom_call.1} parent=1 // pred_region
      %120 = dma.done [#allocation9], 1024
    $region69: #{tpu_custom_call.1} parent=1 // pred_fallthru
      _
    // Predicated region
    $region70: #{tpu_custom_call.1} parent=1 // pred_check
      _
    $region71: #{tpu_custom_call.1} parent=1 // pred_check_branch
      %122 = sbr.rel (0) target = $region73
    $region72: #{tpu_custom_call.1} parent=1 // pred_region
      %123 = dma.done [#allocation12], 1024
    $region73: #{tpu_custom_call.1} parent=1 // pred_fallthru
      _
    %v125 = vlaneseq
    %v126 = vand.u32 %v125, 127
    %v127 = vld [vmem:[%s0] sm:$0xff]
    %128 = vset.pattern.permute.xlu0 0
    %129 = vperm.xlu0 %128, %v127
    %v130 = vpop.permute.xlu0 %129
    %vm131 = vcmp.eq.s32.totalorder %v130, %v126
    %v132 = vsel %vm131, 1, 0
    %v133 = vcvt.s32.f32 %v132
    %v134 = vpack.c.bf16 %v133, %v133
    %v135 = vld [vmem:[%s1] sm:$0xff]
    %136 = vset.pattern.permute.xlu0 0
    %137 = vperm.xlu0 %136, %v135
    %v138 = vpop.permute.xlu0 %137
    %vm139 = vcmp.eq.s32.totalorder %v138, %v126
    %v140 = vsel %vm139, 1, 0
    %v141 = vcvt.s32.f32 %v140
    %v142 = vpack.c.bf16 %v141, %v141
    %v143 = vld [vmem:[#allocation2] sm:$0xf]
    %v144 = vld [vmem:[#allocation2 + $0x4] sm:$0xf]
    %v145 = vld [vmem:[#allocation2 + $0x8] sm:$0xf]
    %v146 = vld [vmem:[#allocation2 + $0xc] sm:$0xf]
    %v147 = vld [vmem:[#allocation2 + $0x10] sm:$0xf]
    %v148 = vld [vmem:[#allocation2 + $0x14] sm:$0xf]
    %v149 = vld [vmem:[#allocation2 + $0x18] sm:$0xf]
    %v150 = vld [vmem:[#allocation2 + $0x1c] sm:$0xf]
    %v151 = vld [vmem:[#allocation2 + $0x20] sm:$0xf]
    %v152 = vld [vmem:[#allocation2 + $0x24] sm:$0xf]
    %v153 = vld [vmem:[#allocation2 + $0x28] sm:$0xf]
    %v154 = vld [vmem:[#allocation2 + $0x2c] sm:$0xf]
    %v155 = vld [vmem:[#allocation2 + $0x30] sm:$0xf]
    %v156 = vld [vmem:[#allocation2 + $0x34] sm:$0xf]
    %v157 = vld [vmem:[#allocation2 + $0x38] sm:$0xf]
    %v158 = vld [vmem:[#allocation2 + $0x3c] sm:$0xf]
    %v175 = vunpack.c.l.b16 %v143
    %v176 = vunpack.c.l.b16 %v144
    %v177 = vunpack.c.l.b16 %v145
    %v178 = vunpack.c.l.b16 %v146
    %v179 = vunpack.c.l.b16 %v147
    %v180 = vunpack.c.l.b16 %v148
    %v181 = vunpack.c.l.b16 %v149
    %v182 = vunpack.c.l.b16 %v150
    %v183 = vunpack.c.l.b16 %v151
    %v184 = vunpack.c.l.b16 %v152
    %v185 = vunpack.c.l.b16 %v153
    %v186 = vunpack.c.l.b16 %v154
    %v187 = vunpack.c.l.b16 %v155
    %v188 = vunpack.c.l.b16 %v156
    %v189 = vunpack.c.l.b16 %v157
    %v190 = vunpack.c.l.b16 %v158
    %v191 = vpack.c.b16 %v176, %v175
    %v192 = vpack.c.b16 %v178, %v177
    %v193 = vpack.c.b16 %v180, %v179
    %v194 = vpack.c.b16 %v182, %v181
    %v195 = vpack.c.b16 %v184, %v183
    %v196 = vpack.c.b16 %v186, %v185
    %v197 = vpack.c.b16 %v188, %v187
    %v198 = vpack.c.b16 %v190, %v189
    %207 = vmatprep.subr.bf16.mxu0 0
    %208 = vmatpush1.bf16.msra.mxu0 %v191
    %209 = vmatprep.subr.bf16.mxu0 0
    %210 = vmatpush1.bf16.msra.mxu0 %v192
    %211 = vmatprep.subr.bf16.mxu0 0
    %212 = vmatpush1.bf16.msra.mxu0 %v193
    %213 = vmatprep.subr.bf16.mxu0 0
    %214 = vmatpush1.bf16.msra.mxu0 %v194
    %215 = vmatprep.subr.bf16.mxu0 0
    %216 = vmatpush1.bf16.msra.mxu0 %v195
    %217 = vmatprep.subr.bf16.mxu0 0
    %218 = vmatpush1.bf16.msra.mxu0 %v196
    %219 = vmatprep.subr.bf16.mxu0 0
    %220 = vmatpush1.bf16.msra.mxu0 %v197
    %221 = vmatprep.subr.bf16.mxu0 0
    %222 = vmatpush1.bf16.msra.mxu0 %v198
    %223 = vmatprep.subr.bf16.mxu0 0
    %224 = vmatpush1.bf16.msra.mxu0 0
    %225 = vmatprep.subr.bf16.mxu0 0
    %226 = vmatpush1.bf16.msra.mxu0 0
    %227 = vmatprep.subr.bf16.mxu0 0
    %228 = vmatpush1.bf16.msra.mxu0 0
    %229 = vmatprep.subr.bf16.mxu0 0
    %230 = vmatpush1.bf16.msra.mxu0 0
    %231 = vmatprep.subr.bf16.mxu0 0
    %232 = vmatpush1.bf16.msra.mxu0 0
    %233 = vmatprep.subr.bf16.mxu0 0
    %234 = vmatpush1.bf16.msra.mxu0 0
    %235 = vmatprep.subr.bf16.mxu0 0
    %236 = vmatpush1.bf16.msra.mxu0 0
    %237 = vmatprep.subr.bf16.mxu0 0
    %238 = vmatpush1.bf16.msra.mxu0 0
    %239 = vmatprep.mubr.bf16.mxu0 0
    %240 = vmatmul.mubr.bf16.gmra.mrb[0].mxu0 %v134
    %v241 = vpop.f32.mrb[0].mxu0
    %v242 = vadd.f32 0.0, %v241
    %v243 = vpop.f32.mrb[0].mxu0
    %v244 = vpop.f32.mrb[0].mxu0
    %v245 = vpop.f32.mrb[0].mxu0
    %246 = vdwg.mxu0
    %v247 = vld [vmem:[#allocation5] sm:$0xf]
    %v248 = vld [vmem:[#allocation5 + $0x4] sm:$0xf]
    %v249 = vld [vmem:[#allocation5 + $0x8] sm:$0xf]
    %v250 = vld [vmem:[#allocation5 + $0xc] sm:$0xf]
    %v251 = vld [vmem:[#allocation5 + $0x10] sm:$0xf]
    %v252 = vld [vmem:[#allocation5 + $0x14] sm:$0xf]
    %v253 = vld [vmem:[#allocation5 + $0x18] sm:$0xf]
    %v254 = vld [vmem:[#allocation5 + $0x1c] sm:$0xf]
    %v255 = vld [vmem:[#allocation5 + $0x20] sm:$0xf]
    %v256 = vld [vmem:[#allocation5 + $0x24] sm:$0xf]
    %v257 = vld [vmem:[#allocation5 + $0x28] sm:$0xf]
    %v258 = vld [vmem:[#allocation5 + $0x2c] sm:$0xf]
    %v259 = vld [vmem:[#allocation5 + $0x30] sm:$0xf]
    %v260 = vld [vmem:[#allocation5 + $0x34] sm:$0xf]
    %v261 = vld [vmem:[#allocation5 + $0x38] sm:$0xf]
    %v262 = vld [vmem:[#allocation5 + $0x3c] sm:$0xf]
    %v279 = vunpack.c.l.b16 %v247
    %v280 = vunpack.c.l.b16 %v248
    %v281 = vunpack.c.l.b16 %v249
    %v282 = vunpack.c.l.b16 %v250
    %v283 = vunpack.c.l.b16 %v251
    %v284 = vunpack.c.l.b16 %v252
    %v285 = vunpack.c.l.b16 %v253
    %v286 = vunpack.c.l.b16 %v254
    %v287 = vunpack.c.l.b16 %v255
    %v288 = vunpack.c.l.b16 %v256
    %v289 = vunpack.c.l.b16 %v257
    %v290 = vunpack.c.l.b16 %v258
    %v291 = vunpack.c.l.b16 %v259
    %v292 = vunpack.c.l.b16 %v260
    %v293 = vunpack.c.l.b16 %v261
    %v294 = vunpack.c.l.b16 %v262
    %v295 = vpack.c.b16 %v280, %v279
    %v296 = vpack.c.b16 %v282, %v281
    %v297 = vpack.c.b16 %v284, %v283
    %v298 = vpack.c.b16 %v286, %v285
    %v299 = vpack.c.b16 %v288, %v287
    %v300 = vpack.c.b16 %v290, %v289
    %v301 = vpack.c.b16 %v292, %v291
    %v302 = vpack.c.b16 %v294, %v293
    %311 = vmatprep.subr.bf16.mxu0 0
    %312 = vmatpush1.bf16.msra.mxu0 %v295
    %313 = vmatprep.subr.bf16.mxu0 0
    %314 = vmatpush1.bf16.msra.mxu0 %v296
    %315 = vmatprep.subr.bf16.mxu0 0
    %316 = vmatpush1.bf16.msra.mxu0 %v297
    %317 = vmatprep.subr.bf16.mxu0 0
    %318 = vmatpush1.bf16.msra.mxu0 %v298
    %319 = vmatprep.subr.bf16.mxu0 0
    %320 = vmatpush1.bf16.msra.mxu0 %v299
    %321 = vmatprep.subr.bf16.mxu0 0
    %322 = vmatpush1.bf16.msra.mxu0 %v300
    %323 = vmatprep.subr.bf16.mxu0 0
    %324 = vmatpush1.bf16.msra.mxu0 %v301
    %325 = vmatprep.subr.bf16.mxu0 0
    %326 = vmatpush1.bf16.msra.mxu0 %v302
    %327 = vmatprep.subr.bf16.mxu0 0
    %328 = vmatpush1.bf16.msra.mxu0 0
    %329 = vmatprep.subr.bf16.mxu0 0
    %330 = vmatpush1.bf16.msra.mxu0 0
    %331 = vmatprep.subr.bf16.mxu0 0
    %332 = vmatpush1.bf16.msra.mxu0 0
    %333 = vmatprep.subr.bf16.mxu0 0
    %334 = vmatpush1.bf16.msra.mxu0 0
    %335 = vmatprep.subr.bf16.mxu0 0
    %336 = vmatpush1.bf16.msra.mxu0 0
    %337 = vmatprep.subr.bf16.mxu0 0
    %338 = vmatpush1.bf16.msra.mxu0 0
    %339 = vmatprep.subr.bf16.mxu0 0
    %340 = vmatpush1.bf16.msra.mxu0 0
    %341 = vmatprep.subr.bf16.mxu0 0
    %342 = vmatpush1.bf16.msra.mxu0 0
    %343 = vmatprep.mubr.bf16.mxu0 0
    %344 = vmatmul.mubr.bf16.gmra.mrb[0].mxu0 %v142
    %v345 = vpop.f32.mrb[0].mxu0
    %v346 = vadd.f32 0.0, %v345
    %v347 = vpop.f32.mrb[0].mxu0
    %v348 = vpop.f32.mrb[0].mxu0
    %v349 = vpop.f32.mrb[0].mxu0
    %350 = vdwg.mxu0
    %v351 = vmul.f32 %v242, %v346
    %v352 = vadd.f32 %v242, %v346
    %v353 = vpack.c.bf16 %v352, %v352
    %v354 = vld [vmem:[#allocation7] sm:$0xf]
    %v355 = vld [vmem:[#allocation7 + $0x4] sm:$0xf]
    %v356 = vld [vmem:[#allocation7 + $0x8] sm:$0xf]
    %v357 = vld [vmem:[#allocation7 + $0xc] sm:$0xf]
    %v358 = vld [vmem:[#allocation7 + $0x10] sm:$0xf]
    %v359 = vld [vmem:[#allocation7 + $0x14] sm:$0xf]
    %v360 = vld [vmem:[#allocation7 + $0x18] sm:$0xf]
    %v361 = vld [vmem:[#allocation7 + $0x1c] sm:$0xf]
    %v362 = vld [vmem:[#allocation7 + $0x20] sm:$0xf]
    %v363 = vld [vmem:[#allocation7 + $0x24] sm:$0xf]
    %v364 = vld [vmem:[#allocation7 + $0x28] sm:$0xf]
    %v365 = vld [vmem:[#allocation7 + $0x2c] sm:$0xf]
    %v366 = vld [vmem:[#allocation7 + $0x30] sm:$0xf]
    %v367 = vld [vmem:[#allocation7 + $0x34] sm:$0xf]
    %v368 = vld [vmem:[#allocation7 + $0x38] sm:$0xf]
    %v369 = vld [vmem:[#allocation7 + $0x3c] sm:$0xf]
    %v370 = vld [vmem:[%s5] sm:$0x1]
    %v372 = vlaneseq
    %v373 = vshrl.u32 %v372, 7
    %v374 = vsub.s32 0, %v373
    %v375 = vrot.slane %v370, %v374
    %v393 = vunpack.c.l.b16 %v354
    %v394 = vunpack.c.l.b16 %v355
    %v395 = vunpack.c.l.b16 %v356
    %v396 = vunpack.c.l.b16 %v357
    %v397 = vunpack.c.l.b16 %v358
    %v398 = vunpack.c.l.b16 %v359
    %v399 = vunpack.c.l.b16 %v360
    %v400 = vunpack.c.l.b16 %v361
    %v401 = vunpack.c.l.b16 %v362
    %v402 = vunpack.c.l.b16 %v363
    %v403 = vunpack.c.l.b16 %v364
    %v404 = vunpack.c.l.b16 %v365
    %v405 = vunpack.c.l.b16 %v366
    %v406 = vunpack.c.l.b16 %v367
    %v407 = vunpack.c.l.b16 %v368
    %v408 = vunpack.c.l.b16 %v369
    %v409 = vpack.c.b16 %v394, %v393
    %v410 = vpack.c.b16 %v396, %v395
    %v411 = vpack.c.b16 %v398, %v397
    %v412 = vpack.c.b16 %v400, %v399
    %v413 = vpack.c.b16 %v402, %v401
    %v414 = vpack.c.b16 %v404, %v403
    %v415 = vpack.c.b16 %v406, %v405
    %v416 = vpack.c.b16 %v408, %v407
    %425 = vmatprep.subr.bf16.mxu0 0
    %426 = vmatpush1.bf16.msra.mxu0 %v409
    %427 = vmatprep.subr.bf16.mxu0 0
    %428 = vmatpush1.bf16.msra.mxu0 %v410
    %429 = vmatprep.subr.bf16.mxu0 0
    %430 = vmatpush1.bf16.msra.mxu0 %v411
    %431 = vmatprep.subr.bf16.mxu0 0
    %432 = vmatpush1.bf16.msra.mxu0 %v412
    %433 = vmatprep.subr.bf16.mxu0 0
    %434 = vmatpush1.bf16.msra.mxu0 %v413
    %435 = vmatprep.subr.bf16.mxu0 0
    %436 = vmatpush1.bf16.msra.mxu0 %v414
    %437 = vmatprep.subr.bf16.mxu0 0
    %438 = vmatpush1.bf16.msra.mxu0 %v415
    %439 = vmatprep.subr.bf16.mxu0 0
    %440 = vmatpush1.bf16.msra.mxu0 %v416
    %441 = vmatprep.subr.bf16.mxu0 0
    %442 = vmatpush1.bf16.msra.mxu0 0
    %443 = vmatprep.subr.bf16.mxu0 0
    %444 = vmatpush1.bf16.msra.mxu0 0
    %445 = vmatprep.subr.bf16.mxu0 0
    %446 = vmatpush1.bf16.msra.mxu0 0
    %447 = vmatprep.subr.bf16.mxu0 0
    %448 = vmatpush1.bf16.msra.mxu0 0
    %449 = vmatprep.subr.bf16.mxu0 0
    %450 = vmatpush1.bf16.msra.mxu0 0
    %451 = vmatprep.subr.bf16.mxu0 0
    %452 = vmatpush1.bf16.msra.mxu0 0
    %453 = vmatprep.subr.bf16.mxu0 0
    %454 = vmatpush1.bf16.msra.mxu0 0
    %455 = vmatprep.subr.bf16.mxu0 0
    %456 = vmatpush1.bf16.msra.mxu0 0
    %457 = vmatprep.mubr.bf16.mxu0 0
    %458 = vmatmul.mubr.bf16.gmra.mrb[0].mxu0 %v353
    %v459 = vpop.f32.mrb[0].mxu0
    %v460 = vadd.f32 %v375, %v459
    %v461 = vpop.f32.mrb[0].mxu0
    %v462 = vpop.f32.mrb[0].mxu0
    %v463 = vpop.f32.mrb[0].mxu0
    %464 = vdwg.mxu0
    %v465 = vmax.f32 %v460, 0.0
    %v466 = vpack.c.bf16 %v465, %v465
    %v467 = vld [vmem:[#allocation8] sm:$0xf]
    %v468 = vld [vmem:[#allocation8 + $0x4] sm:$0xf]
    %v469 = vld [vmem:[#allocation8 + $0x8] sm:$0xf]
    %v470 = vld [vmem:[#allocation8 + $0xc] sm:$0xf]
    %v471 = vld [vmem:[#allocation8 + $0x10] sm:$0xf]
    %v472 = vld [vmem:[#allocation8 + $0x14] sm:$0xf]
    %v473 = vld [vmem:[#allocation8 + $0x18] sm:$0xf]
    %v474 = vld [vmem:[#allocation8 + $0x1c] sm:$0xf]
    %v475 = vld [vmem:[#allocation8 + $0x20] sm:$0xf]
    %v476 = vld [vmem:[#allocation8 + $0x24] sm:$0xf]
    %v477 = vld [vmem:[#allocation8 + $0x28] sm:$0xf]
    %v478 = vld [vmem:[#allocation8 + $0x2c] sm:$0xf]
    %v479 = vld [vmem:[#allocation8 + $0x30] sm:$0xf]
    %v480 = vld [vmem:[#allocation8 + $0x34] sm:$0xf]
    %v481 = vld [vmem:[#allocation8 + $0x38] sm:$0xf]
    %v482 = vld [vmem:[#allocation8 + $0x3c] sm:$0xf]
    %v483 = vld [vmem:[%s7] sm:$0x1]
    %v485 = vlaneseq
    %v486 = vshrl.u32 %v485, 7
    %v487 = vsub.s32 0, %v486
    %v488 = vrot.slane %v483, %v487
    %v506 = vunpack.c.l.b16 %v467
    %v507 = vunpack.c.l.b16 %v468
    %v508 = vunpack.c.l.b16 %v469
    %v509 = vunpack.c.l.b16 %v470
    %v510 = vunpack.c.l.b16 %v471
    %v511 = vunpack.c.l.b16 %v472
    %v512 = vunpack.c.l.b16 %v473
    %v513 = vunpack.c.l.b16 %v474
    %v514 = vunpack.c.l.b16 %v475
    %v515 = vunpack.c.l.b16 %v476
    %v516 = vunpack.c.l.b16 %v477
    %v517 = vunpack.c.l.b16 %v478
    %v518 = vunpack.c.l.b16 %v479
    %v519 = vunpack.c.l.b16 %v480
    %v520 = vunpack.c.l.b16 %v481
    %v521 = vunpack.c.l.b16 %v482
    %v522 = vpack.c.b16 %v507, %v506
    %v523 = vpack.c.b16 %v509, %v508
    %v524 = vpack.c.b16 %v511, %v510
    %v525 = vpack.c.b16 %v513, %v512
    %v526 = vpack.c.b16 %v515, %v514
    %v527 = vpack.c.b16 %v517, %v516
    %v528 = vpack.c.b16 %v519, %v518
    %v529 = vpack.c.b16 %v521, %v520
    %538 = vmatprep.subr.bf16.mxu0 0
    %539 = vmatpush1.bf16.msra.mxu0 %v522
    %540 = vmatprep.subr.bf16.mxu0 0
    %541 = vmatpush1.bf16.msra.mxu0 %v523
    %542 = vmatprep.subr.bf16.mxu0 0
    %543 = vmatpush1.bf16.msra.mxu0 %v524
    %544 = vmatprep.subr.bf16.mxu0 0
    %545 = vmatpush1.bf16.msra.mxu0 %v525
    %546 = vmatprep.subr.bf16.mxu0 0
    %547 = vmatpush1.bf16.msra.mxu0 %v526
    %548 = vmatprep.subr.bf16.mxu0 0
    %549 = vmatpush1.bf16.msra.mxu0 %v527
    %550 = vmatprep.subr.bf16.mxu0 0
    %551 = vmatpush1.bf16.msra.mxu0 %v528
    %552 = vmatprep.subr.bf16.mxu0 0
    %553 = vmatpush1.bf16.msra.mxu0 %v529
    %554 = vmatprep.subr.bf16.mxu0 0
    %555 = vmatpush1.bf16.msra.mxu0 0
    %556 = vmatprep.subr.bf16.mxu0 0
    %557 = vmatpush1.bf16.msra.mxu0 0
    %558 = vmatprep.subr.bf16.mxu0 0
    %559 = vmatpush1.bf16.msra.mxu0 0
    %560 = vmatprep.subr.bf16.mxu0 0
    %561 = vmatpush1.bf16.msra.mxu0 0
    %562 = vmatprep.subr.bf16.mxu0 0
    %563 = vmatpush1.bf16.msra.mxu0 0
    %564 = vmatprep.subr.bf16.mxu0 0
    %565 = vmatpush1.bf16.msra.mxu0 0
    %566 = vmatprep.subr.bf16.mxu0 0
    %567 = vmatpush1.bf16.msra.mxu0 0
    %568 = vmatprep.subr.bf16.mxu0 0
    %569 = vmatpush1.bf16.msra.mxu0 0
    %570 = vmatprep.mubr.bf16.mxu0 0
    %571 = vmatmul.mubr.bf16.gmra.mrb[0].mxu0 %v466
    %v572 = vpop.f32.mrb[0].mxu0
    %v573 = vadd.f32 %v488, %v572
    %v574 = vpop.f32.mrb[0].mxu0
    %v575 = vpop.f32.mrb[0].mxu0
    %v576 = vpop.f32.mrb[0].mxu0
    %577 = vdwg.mxu0
    %v578 = vmax.f32 %v573, 0.0
    %v579 = vpack.c.bf16 %v578, %v578
    %v580 = vld [vmem:[#allocation10] sm:$0xf]
    %v581 = vld [vmem:[#allocation10 + $0x4] sm:$0xf]
    %v582 = vld [vmem:[#allocation10 + $0x8] sm:$0xf]
    %v583 = vld [vmem:[#allocation10 + $0xc] sm:$0xf]
    %v584 = vld [vmem:[#allocation10 + $0x10] sm:$0xf]
    %v585 = vld [vmem:[#allocation10 + $0x14] sm:$0xf]
    %v586 = vld [vmem:[#allocation10 + $0x18] sm:$0xf]
    %v587 = vld [vmem:[#allocation10 + $0x1c] sm:$0xf]
    %v588 = vld [vmem:[#allocation10 + $0x20] sm:$0xf]
    %v589 = vld [vmem:[#allocation10 + $0x24] sm:$0xf]
    %v590 = vld [vmem:[#allocation10 + $0x28] sm:$0xf]
    %v591 = vld [vmem:[#allocation10 + $0x2c] sm:$0xf]
    %v592 = vld [vmem:[#allocation10 + $0x30] sm:$0xf]
    %v593 = vld [vmem:[#allocation10 + $0x34] sm:$0xf]
    %v594 = vld [vmem:[#allocation10 + $0x38] sm:$0xf]
    %v595 = vld [vmem:[#allocation10 + $0x3c] sm:$0xf]
    %v596 = vld [vmem:[%s9] sm:$0x1]
    %v598 = vlaneseq
    %v599 = vshrl.u32 %v598, 7
    %v600 = vsub.s32 0, %v599
    %v601 = vrot.slane %v596, %v600
    %v619 = vunpack.c.l.b16 %v580
    %v620 = vunpack.c.l.b16 %v581
    %v621 = vunpack.c.l.b16 %v582
    %v622 = vunpack.c.l.b16 %v583
    %v623 = vunpack.c.l.b16 %v584
    %v624 = vunpack.c.l.b16 %v585
    %v625 = vunpack.c.l.b16 %v586
    %v626 = vunpack.c.l.b16 %v587
    %v627 = vunpack.c.l.b16 %v588
    %v628 = vunpack.c.l.b16 %v589
    %v629 = vunpack.c.l.b16 %v590
    %v630 = vunpack.c.l.b16 %v591
    %v631 = vunpack.c.l.b16 %v592
    %v632 = vunpack.c.l.b16 %v593
    %v633 = vunpack.c.l.b16 %v594
    %v634 = vunpack.c.l.b16 %v595
    %v635 = vpack.c.b16 %v620, %v619
    %v636 = vpack.c.b16 %v622, %v621
    %v637 = vpack.c.b16 %v624, %v623
    %v638 = vpack.c.b16 %v626, %v625
    %v639 = vpack.c.b16 %v628, %v627
    %v640 = vpack.c.b16 %v630, %v629
    %v641 = vpack.c.b16 %v632, %v631
    %v642 = vpack.c.b16 %v634, %v633
    %651 = vmatprep.subr.bf16.mxu0 0
    %652 = vmatpush1.bf16.msra.mxu0 %v635
    %653 = vmatprep.subr.bf16.mxu0 0
    %654 = vmatpush1.bf16.msra.mxu0 %v636
    %655 = vmatprep.subr.bf16.mxu0 0
    %656 = vmatpush1.bf16.msra.mxu0 %v637
    %657 = vmatprep.subr.bf16.mxu0 0
    %658 = vmatpush1.bf16.msra.mxu0 %v638
    %659 = vmatprep.subr.bf16.mxu0 0
    %660 = vmatpush1.bf16.msra.mxu0 %v639
    %661 = vmatprep.subr.bf16.mxu0 0
    %662 = vmatpush1.bf16.msra.mxu0 %v640
    %663 = vmatprep.subr.bf16.mxu0 0
    %664 = vmatpush1.bf16.msra.mxu0 %v641
    %665 = vmatprep.subr.bf16.mxu0 0
    %666 = vmatpush1.bf16.msra.mxu0 %v642
    %667 = vmatprep.subr.bf16.mxu0 0
    %668 = vmatpush1.bf16.msra.mxu0 0
    %669 = vmatprep.subr.bf16.mxu0 0
    %670 = vmatpush1.bf16.msra.mxu0 0
    %671 = vmatprep.subr.bf16.mxu0 0
    %672 = vmatpush1.bf16.msra.mxu0 0
    %673 = vmatprep.subr.bf16.mxu0 0
    %674 = vmatpush1.bf16.msra.mxu0 0
    %675 = vmatprep.subr.bf16.mxu0 0
    %676 = vmatpush1.bf16.msra.mxu0 0
    %677 = vmatprep.subr.bf16.mxu0 0
    %678 = vmatpush1.bf16.msra.mxu0 0
    %679 = vmatprep.subr.bf16.mxu0 0
    %680 = vmatpush1.bf16.msra.mxu0 0
    %681 = vmatprep.subr.bf16.mxu0 0
    %682 = vmatpush1.bf16.msra.mxu0 0
    %683 = vmatprep.mubr.bf16.mxu0 0
    %684 = vmatmul.mubr.bf16.gmra.mrb[0].mxu0 %v579
    %v685 = vpop.f32.mrb[0].mxu0
    %v686 = vadd.f32 %v601, %v685
    %v687 = vpop.f32.mrb[0].mxu0
    %v688 = vpop.f32.mrb[0].mxu0
    %v689 = vpop.f32.mrb[0].mxu0
    %690 = vdwg.mxu0
    %v691 = vmax.f32 %v686, 0.0
    %v692 = vadd.f32 %v351, %v691
    %v693 = vpack.c.bf16 %v692, %v692
    %v694 = vld [vmem:[#allocation11] sm:$0xf]
    %v695 = vld [vmem:[#allocation11 + $0x4] sm:$0xf]
    %v696 = vld [vmem:[#allocation11 + $0x8] sm:$0xf]
    %v697 = vld [vmem:[#allocation11 + $0xc] sm:$0xf]
    %v698 = vld [vmem:[#allocation11 + $0x10] sm:$0xf]
    %v699 = vld [vmem:[#allocation11 + $0x14] sm:$0xf]
    %v700 = vld [vmem:[#allocation11 + $0x18] sm:$0xf]
    %v701 = vld [vmem:[#allocation11 + $0x1c] sm:$0xf]
    %v702 = vld [vmem:[#allocation11 + $0x20] sm:$0xf]
    %v703 = vld [vmem:[#allocation11 + $0x24] sm:$0xf]
    %v704 = vld [vmem:[#allocation11 + $0x28] sm:$0xf]
    %v705 = vld [vmem:[#allocation11 + $0x2c] sm:$0xf]
    %v706 = vld [vmem:[#allocation11 + $0x30] sm:$0xf]
    %v707 = vld [vmem:[#allocation11 + $0x34] sm:$0xf]
    %v708 = vld [vmem:[#allocation11 + $0x38] sm:$0xf]
    %v709 = vld [vmem:[#allocation11 + $0x3c] sm:$0xf]
    %v710 = vld [vmem:[%s11] sm:$0x1]
    %v712 = vlaneseq
    %v713 = vshrl.u32 %v712, 7
    %v714 = vsub.s32 0, %v713
    %v715 = vrot.slane %v710, %v714
    %v733 = vunpack.c.l.b16 %v694
    %v734 = vunpack.c.l.b16 %v695
    %v735 = vunpack.c.l.b16 %v696
    %v736 = vunpack.c.l.b16 %v697
    %v737 = vunpack.c.l.b16 %v698
    %v738 = vunpack.c.l.b16 %v699
    %v739 = vunpack.c.l.b16 %v700
    %v740 = vunpack.c.l.b16 %v701
    %v741 = vunpack.c.l.b16 %v702
    %v742 = vunpack.c.l.b16 %v703
    %v743 = vunpack.c.l.b16 %v704
    %v744 = vunpack.c.l.b16 %v705
    %v745 = vunpack.c.l.b16 %v706
    %v746 = vunpack.c.l.b16 %v707
    %v747 = vunpack.c.l.b16 %v708
    %v748 = vunpack.c.l.b16 %v709
    %v749 = vpack.c.b16 %v734, %v733
    %v750 = vpack.c.b16 %v736, %v735
    %v751 = vpack.c.b16 %v738, %v737
    %v752 = vpack.c.b16 %v740, %v739
    %v753 = vpack.c.b16 %v742, %v741
    %v754 = vpack.c.b16 %v744, %v743
    %v755 = vpack.c.b16 %v746, %v745
    %v756 = vpack.c.b16 %v748, %v747
    %765 = vmatprep.subr.bf16.mxu0 0
    %766 = vmatpush1.bf16.msra.mxu0 %v749
    %767 = vmatprep.subr.bf16.mxu0 0
    %768 = vmatpush1.bf16.msra.mxu0 %v750
    %769 = vmatprep.subr.bf16.mxu0 0
    %770 = vmatpush1.bf16.msra.mxu0 %v751
    %771 = vmatprep.subr.bf16.mxu0 0
    %772 = vmatpush1.bf16.msra.mxu0 %v752
    %773 = vmatprep.subr.bf16.mxu0 0
    %774 = vmatpush1.bf16.msra.mxu0 %v753
    %775 = vmatprep.subr.bf16.mxu0 0
    %776 = vmatpush1.bf16.msra.mxu0 %v754
    %777 = vmatprep.subr.bf16.mxu0 0
    %778 = vmatpush1.bf16.msra.mxu0 %v755
    %779 = vmatprep.subr.bf16.mxu0 0
    %780 = vmatpush1.bf16.msra.mxu0 %v756
    %781 = vmatprep.subr.bf16.mxu0 0
    %782 = vmatpush1.bf16.msra.mxu0 0
    %783 = vmatprep.subr.bf16.mxu0 0
    %784 = vmatpush1.bf16.msra.mxu0 0
    %785 = vmatprep.subr.bf16.mxu0 0
    %786 = vmatpush1.bf16.msra.mxu0 0
    %787 = vmatprep.subr.bf16.mxu0 0
    %788 = vmatpush1.bf16.msra.mxu0 0
    %789 = vmatprep.subr.bf16.mxu0 0
    %790 = vmatpush1.bf16.msra.mxu0 0
    %791 = vmatprep.subr.bf16.mxu0 0
    %792 = vmatpush1.bf16.msra.mxu0 0
    %793 = vmatprep.subr.bf16.mxu0 0
    %794 = vmatpush1.bf16.msra.mxu0 0
    %795 = vmatprep.subr.bf16.mxu0 0
    %796 = vmatpush1.bf16.msra.mxu0 0
    %797 = vmatprep.mubr.bf16.mxu0 0
    %798 = vmatmul.mubr.bf16.gmra.mrb[0].mxu0 %v693
    %v799 = vpop.f32.mrb[0].mxu0
    %v800 = vadd.f32 %v715, %v799
    %v801 = vpop.f32.mrb[0].mxu0
    %v802 = vpop.f32.mrb[0].mxu0
    %v803 = vpop.f32.mrb[0].mxu0
    %804 = vdwg.mxu0
    %805 = vst [vmem:[#allocation13] sm:$0xff] %v800
    // Predicated region
    $region74: #{tpu_custom_call.1} parent=1 // pred_check
      _
    $region75: #{tpu_custom_call.1} parent=1 // pred_check_branch
      %807 = sbr.rel (0) target = $region77
    $region76: #{tpu_custom_call.1} parent=1 // pred_region
      %s809 = ssub.s32 128, 128
      %810 = vsyncadd [#allocation4], %s809
      %s812 = sshll.u32 [#allocation13], 4
      %s813 = int_to_ptr.vmem [resolvable:$true] %s812
      %815 = dma.vmem_to_hbm [thread:$0]  %s813, 128, %s12, [#allocation4]
    $region77: #{tpu_custom_call.1} parent=1 // pred_fallthru
      _
    // Predicated region
    $region78: #{tpu_custom_call.1} parent=1 // pred_check
      _
    $region79: #{tpu_custom_call.1} parent=1 // pred_check_branch
      %817 = sbr.rel (0) target = $region81
    $region80: #{tpu_custom_call.1} parent=1 // pred_region
      %818 = dma.done [#allocation4], 128
    $region81: #{tpu_custom_call.1} parent=1 // pred_fallthru
      _
    %819 = vsyncpa [#allocation3], 1
    %820 = vsyncpa [#allocation6], 1
    %821 = vsyncpa [#allocation9], 1
    %822 = vsyncpa [#allocation12], 1
    %823 = vsyncpa [#allocation4], 1

</llo_original>
